<compile_context>
chip_gen: v6e
topology: v6e:2x2x1
jax: 0.10.0
libtpu: 0.0.40
codegen_flags: <defaults>
</compile_context>

<pallas_src>
import jax
import jax.numpy as jnp
from jax.experimental import pallas as pl
from jax.experimental.pallas import tpu as pltpu


# ----------------------------- Pallas kernel ------------------------------- #

def _channel_att_kernel(x_ref, w1t_ref, b1_ref, w2_ref, b2_ref, o_ref):
    """Block: x (BT, C, HW).  out = x * sigmoid(MLP(avgpool) + MLP(maxpool))."""
    w1t = w1t_ref[...]            # (C, Ch)  == W1.T
    b1 = b1_ref[...]              # (1, Ch)
    w2 = w2_ref[...]              # (C, Ch)  == W2
    b2 = b2_ref[...]              # (C, 1)
    ch = w1t.shape[1]

    bt = x_ref.shape[0]
    inv_hw = 1.0 / x_ref.shape[2]

    for b in range(bt):                                    # static unroll, BT small
        x = x_ref[b].astype(jnp.float32)                   # (C, HW) lane-dense
        avg = jnp.sum(x, axis=1, keepdims=True) * inv_hw   # (C, 1)
        mx = jnp.max(x, axis=1, keepdims=True)             # (C, 1)

        # Hidden layer for BOTH pooled vectors in one cross-sublane reduce:
        #   (C, 2*Ch) -> (1, 2*Ch)
        prod = jnp.concatenate([w1t * avg, w1t * mx], axis=1)
        h = jnp.sum(prod, axis=0, keepdims=True)           # (1, 2*Ch)
        ha = jnp.maximum(h[:, :ch] + b1, 0.0)              # relu(W1 @ avg + b1)
        hm = jnp.maximum(h[:, ch:] + b1, 0.0)              # relu(W1 @ max + b1)

        # Second (linear) layer applied once to the summed hidden; one lane reduce.
        # fc(avg) + fc(max) = W2 @ (ha + hm) + 2*b2
        out = jnp.sum(w2 * (ha + hm), axis=1, keepdims=True) + 2.0 * b2   # (C, 1)
        scale = jax.nn.sigmoid(out)                        # (C, 1)

        o_ref[b] = (x * scale).astype(o_ref.dtype)


# ------------------------------ JAX wrapper -------------------------------- #

def _choose_batch_tile(B, bytes_per_batch, target_bytes=2 << 20, max_unroll=8):
    """Largest divisor of B with block <= target bytes and >=2 grid steps (if B>=2)."""
    bt = 1
    for cand in range(min(B, max_unroll), 0, -1):
        if B % cand:
            continue
        if cand * bytes_per_batch > target_bytes:
            continue
        if B >= 2 and B // cand < 2:          # keep both TCs busy on v7x
            continue
        bt = cand
        break
    return bt


def channel_attention_pallas(x, params):
    """x: (B, C, H, W).  params = (W1, b1, W2, b2) in PyTorch Linear shapes."""
    W1, b1, W2, b2 = params
    B, C, H, W = x.shape
    Ch = W1.shape[0]
    HW = H * W

    # Kernel-friendly parameter layouts (pure glue, tiny).
    w1t = W1.T                    # (C, Ch)
    b1r = b1.reshape(1, Ch)       # (1, Ch)
    b2c = b2.reshape(C, 1)        # (C, 1)

    bytes_per_batch = C * HW * x.dtype.itemsize
    BT = _choose_batch_tile(B, bytes_per_batch)
    grid = (B // BT,)

    x2d = x.reshape(B, C, HW)     # lane-dense: H*W on lanes (multiple of 128 here)
    y2d = pl.pallas_call(
        _channel_att_kernel,
        out_shape=jax.ShapeDtypeStruct((B, C, HW), x.dtype),
        grid=grid,
        in_specs=[
            pl.BlockSpec((BT, C, HW), lambda i: (i, 0, 0)),
            pl.BlockSpec((C, Ch), lambda i: (0, 0)),
            pl.BlockSpec((1, Ch), lambda i: (0, 0)),
            pl.BlockSpec((C, Ch), lambda i: (0, 0)),
            pl.BlockSpec((C, 1), lambda i: (0, 0)),
        ],
        out_specs=pl.BlockSpec((BT, C, HW), lambda i: (i, 0, 0)),
        compiler_params=pltpu.CompilerParams(
            dimension_semantics=("parallel",),
            vmem_limit_bytes=16 * 1024 * 1024,   # ample for these blocks, safe on all gens
        ),
    )(x2d, w1t, b1r, W2, b2c)
    return y2d.reshape(B, C, H, W)


# --------------------------- pure-JAX reference ----------------------------- #

def channel_attention_ref(x, params):
    W1, b1, W2, b2 = params
    avg = jnp.mean(x, axis=(2, 3))            # (B, C)
    mx = jnp.max(x, axis=(2, 3))              # (B, C)

    def fc(p):
        h = jax.nn.relu(p @ W1.T + b1)
        return h @ W2.T + b2

    scale = jax.nn.sigmoid(fc(avg) + fc(mx))  # (B, C)
    return x * scale[:, :, None, None]


# ---------------------------------- main ------------------------------------ #

if __name__ == "__main__":
    B, C, H, W = 2, 32, 16, 16
    reduction = 16
    Ch = C // reduction

    key = jax.random.PRNGKey(0)
    ks = jax.random.split(key, 5)

    # Deterministic synthetic parameters (PyTorch nn.Linear shapes).
    W1 = jax.random.normal(ks[0], (Ch, C), jnp.float32) * 0.2   # Linear(C -> C//r)
    b1 = jax.random.normal(ks[1], (Ch,), jnp.float32) * 0.1
    W2 = jax.random.normal(ks[2], (C, Ch), jnp.float32) * 0.2   # Linear(C//r -> C)
    b2 = jax.random.normal(ks[3], (C,), jnp.float32) * 0.1
    params = (W1, b1, W2, b2)

    x = jax.random.normal(ks[4], (B, C, H, W), jnp.float32)

    out = jax.block_until_ready(channel_attention_pallas(x, params))
    ref = jax.block_until_ready(channel_attention_ref(x, params))

    assert out.shape == (B, C, H, W)
    max_err = float(jnp.max(jnp.abs(out - ref)))
    assert jnp.allclose(out, ref, rtol=1e-3, atol=1e-3), max_err
    print("KERNEL_OK")
</pallas_src>

<mosaic_0001>
module attributes {stable_mosaic.version = 11 : i64} {
  func.func @_channel_att_kernel(%arg0: i32, %arg1: memref<1x32x256xf32, #tpu.memory_space<vmem>>, %arg2: memref<32x2xf32, #tpu.memory_space<vmem>>, %arg3: memref<1x2xf32, #tpu.memory_space<vmem>>, %arg4: memref<32x2xf32, #tpu.memory_space<vmem>>, %arg5: memref<32x1xf32, #tpu.memory_space<vmem>>, %arg6: memref<1x32x256xf32, #tpu.memory_space<vmem>>) attributes {dimension_semantics = [#tpu.dimension_semantics<parallel>], iteration_bounds = array<i64: 2>, scalar_prefetch = 0 : i64, scratch_operands = 0 : i64, tpu.core_type = #tpu.core_type<tc>, window_params = [{transform_indices = @transform_0, window_bounds = array<i64: 1, 32, 256>}, {pipeline_mode = #tpu.pipeline_mode<synchronous>, transform_indices = @transform_1, window_bounds = array<i64: 32, 2>}, {pipeline_mode = #tpu.pipeline_mode<synchronous>, transform_indices = @transform_2, window_bounds = array<i64: 1, 2>}, {pipeline_mode = #tpu.pipeline_mode<synchronous>, transform_indices = @transform_3, window_bounds = array<i64: 32, 2>}, {pipeline_mode = #tpu.pipeline_mode<synchronous>, transform_indices = @transform_4, window_bounds = array<i64: 32, 1>}, {transform_indices = @transform_5, window_bounds = array<i64: 1, 32, 256>}]} {
    %c0 = arith.constant 0 : index
    %c0_0 = arith.constant 0 : index
    %0 = vector.load %arg2[%c0, %c0_0] : memref<32x2xf32, #tpu.memory_space<vmem>>, vector<32x2xf32>
    %c0_1 = arith.constant 0 : index
    %c0_2 = arith.constant 0 : index
    %1 = vector.load %arg3[%c0_1, %c0_2] : memref<1x2xf32, #tpu.memory_space<vmem>>, vector<1x2xf32>
    %c0_3 = arith.constant 0 : index
    %c0_4 = arith.constant 0 : index
    %2 = vector.load %arg4[%c0_3, %c0_4] : memref<32x2xf32, #tpu.memory_space<vmem>>, vector<32x2xf32>
    %c0_5 = arith.constant 0 : index
    %c0_6 = arith.constant 0 : index
    %3 = vector.load %arg5[%c0_5, %c0_6] : memref<32x1xf32, #tpu.memory_space<vmem>>, vector<32x1xf32>
    %c0_7 = arith.constant 0 : index
    %c0_8 = arith.constant 0 : index
    %c0_9 = arith.constant 0 : index
    %4 = vector.load %arg1[%c0_7, %c0_8, %c0_9] : memref<1x32x256xf32, #tpu.memory_space<vmem>>, vector<1x32x256xf32>
    %5 = vector.shape_cast %4 : vector<1x32x256xf32> to vector<32x256xf32>
    %cst = arith.constant dense<0.000000e+00> : vector<32xf32>
    %6 = vector.multi_reduction <add>, %5, %cst [1] : vector<32x256xf32> to vector<32xf32>
    %7 = vector.shape_cast %6 : vector<32xf32> to vector<32x1xf32>
    %cst_10 = arith.constant 3.906250e-03 : f32
    %8 = vector.broadcast %cst_10 : f32 to vector<32x1xf32>
    %9 = arith.mulf %7, %8 : vector<32x1xf32>
    %cst_11 = arith.constant dense<0xFF800000> : vector<32xf32>
    %10 = vector.multi_reduction <maximumf>, %5, %cst_11 [1] : vector<32x256xf32> to vector<32xf32>
    %11 = vector.shape_cast %10 : vector<32xf32> to vector<32x1xf32>
    %12 = vector.broadcast %9 : vector<32x1xf32> to vector<32x2xf32>
    %13 = arith.mulf %0, %12 : vector<32x2xf32>
    %14 = vector.broadcast %11 : vector<32x1xf32> to vector<32x2xf32>
    %15 = arith.mulf %0, %14 : vector<32x2xf32>
    %16 = tpu.concatenate %13, %15 in 1 : vector<32x2xf32>, vector<32x2xf32> -> vector<32x4xf32>
    %cst_12 = arith.constant dense<0.000000e+00> : vector<4xf32>
    %17 = vector.multi_reduction <add>, %16, %cst_12 [0] : vector<32x4xf32> to vector<4xf32>
    %18 = vector.shape_cast %17 : vector<4xf32> to vector<1x4xf32>
    %19 = vector.extract_strided_slice %18 {offsets = [0, 0], sizes = [1, 2], strides = [1, 1]} : vector<1x4xf32> to vector<1x2xf32>
    %20 = arith.addf %19, %1 : vector<1x2xf32>
    %cst_13 = arith.constant 0.000000e+00 : f32
    %21 = vector.broadcast %cst_13 : f32 to vector<1x2xf32>
    %22 = arith.maximumf %20, %21 : vector<1x2xf32>
    %23 = vector.extract_strided_slice %18 {offsets = [0, 2], sizes = [1, 2], strides = [1, 1]} : vector<1x4xf32> to vector<1x2xf32>
    %24 = arith.addf %23, %1 : vector<1x2xf32>
    %cst_14 = arith.constant 0.000000e+00 : f32
    %25 = vector.broadcast %cst_14 : f32 to vector<1x2xf32>
    %26 = arith.maximumf %24, %25 : vector<1x2xf32>
    %27 = arith.addf %22, %26 : vector<1x2xf32>
    %28 = vector.broadcast %27 : vector<1x2xf32> to vector<32x2xf32>
    %29 = arith.mulf %2, %28 : vector<32x2xf32>
    %cst_15 = arith.constant dense<0.000000e+00> : vector<32xf32>
    %30 = vector.multi_reduction <add>, %29, %cst_15 [1] : vector<32x2xf32> to vector<32xf32>
    %31 = vector.shape_cast %30 : vector<32xf32> to vector<32x1xf32>
    %cst_16 = arith.constant 2.000000e+00 : f32
    %32 = vector.broadcast %cst_16 : f32 to vector<32x1xf32>
    %33 = arith.mulf %32, %3 : vector<32x1xf32>
    %34 = arith.addf %31, %33 : vector<32x1xf32>
    %35 = arith.negf %34 : vector<32x1xf32>
    %36 = math.exp %35 : vector<32x1xf32>
    %cst_17 = arith.constant 1.000000e+00 : f32
    %37 = vector.broadcast %cst_17 : f32 to vector<32x1xf32>
    %38 = arith.addf %37, %36 : vector<32x1xf32>
    %39 = arith.divf %37, %38 : vector<32x1xf32>
    %40 = vector.broadcast %39 : vector<32x1xf32> to vector<32x256xf32>
    %41 = arith.mulf %5, %40 : vector<32x256xf32>
    %c0_18 = arith.constant 0 : index
    %c0_19 = arith.constant 0 : index
    %c0_20 = arith.constant 0 : index
    %42 = vector.load %arg6[%c0_18, %c0_19, %c0_20] : memref<1x32x256xf32, #tpu.memory_space<vmem>>, vector<1x32x256xf32>
    %43 = vector.shape_cast %42 : vector<1x32x256xf32> to vector<32x256xf32>
    %44 = vector.shape_cast %41 : vector<32x256xf32> to vector<1x32x256xf32>
    tpu.vector_store %arg6[%c0_18, %c0_19, %c0_20], %44 {strides = array<i32>} : memref<1x32x256xf32, #tpu.memory_space<vmem>>, vector<1x32x256xf32>,
    return
  }
  func.func @transform_0(%arg0: i32) -> (i32, i32, i32) {
    %c0_i32 = arith.constant 0 : i32
    %c0_i32_0 = arith.constant 0 : i32
    %c0_i32_1 = arith.constant 0 : i32
    return %arg0, %c0_i32, %c0_i32_0 : i32, i32, i32
  }
  func.func @transform_1(%arg0: i32) -> (i32, i32) {
    %c0_i32 = arith.constant 0 : i32
    %c0_i32_0 = arith.constant 0 : i32
    %c0_i32_1 = arith.constant 0 : i32
    return %c0_i32, %c0_i32_0 : i32, i32
  }
  func.func @transform_2(%arg0: i32) -> (i32, i32) {
    %c0_i32 = arith.constant 0 : i32
    %c0_i32_0 = arith.constant 0 : i32
    %c0_i32_1 = arith.constant 0 : i32
    return %c0_i32, %c0_i32_0 : i32, i32
  }
  func.func @transform_3(%arg0: i32) -> (i32, i32) {
    %c0_i32 = arith.constant 0 : i32
    %c0_i32_0 = arith.constant 0 : i32
    %c0_i32_1 = arith.constant 0 : i32
    return %c0_i32, %c0_i32_0 : i32, i32
  }
  func.func @transform_4(%arg0: i32) -> (i32, i32) {
    %c0_i32 = arith.constant 0 : i32
    %c0_i32_0 = arith.constant 0 : i32
    %c0_i32_1 = arith.constant 0 : i32
    return %c0_i32, %c0_i32_0 : i32, i32
  }
  func.func @transform_5(%arg0: i32) -> (i32, i32, i32) {
    %c0_i32 = arith.constant 0 : i32
    %c0_i32_0 = arith.constant 0 : i32
    %c0_i32_1 = arith.constant 0 : i32
    return %arg0, %c0_i32, %c0_i32_0 : i32, i32, i32
  }
}

</mosaic_0001>

<llo_original>
// kernel: tpu_custom_call.1
$region0: #{tpu_custom_call.1}
  #allocation0 [shape = 'u32[]', space=smem, size = 0x4, offset = 0x4, fixed_abs, tag = 'smem constant byte address 0x4 - core index']
  #allocation1 [shape = 'u32[144,128]{1,0:T(1,128)}', space=vmem, size = 0x12000, scoped, tag = 'internal scratch']
  %s0 = inlined_call_operand.hbm [shape: f32[2,32,256], index: 0, kind: input, shape index: {}]
  %s1 = inlined_call_operand.vmem [shape: f32[32,2], index: 1, kind: input, shape index: {}]
  %s2 = inlined_call_operand.vmem [shape: f32[1,2], index: 2, kind: input, shape index: {}]
  %s3 = inlined_call_operand.vmem [shape: f32[32,2], index: 3, kind: input, shape index: {}]
  %s4 = inlined_call_operand.vmem [shape: f32[32,1], index: 4, kind: input, shape index: {}]
  %s5 = inlined_call_operand.hbm [shape: f32[2,32,256], index: 5, kind: output, shape index: {}]
  %s6 = sld [smem:[#allocation0]]
  $region57: #{tpu_custom_call.1} parent=0
    _
  %s8 = ssub.s32 1, %s6
  %s9 = scalar_select 0, %s8, %s6
  $region1: #{tpu_custom_call.1} parent=0
    #allocation2 [shape = 'u8[65536]{0}', space=vmem, size = 0x10000, scoped, tag = 'input window, operand 0']
    #allocation3 [shape = 's32[2]{0}', space=sflag, size = 0x8, scoped, tag = 'scoped memory for tpu_custom_call.1']
    #allocation4 [shape = 's32[2]{0}', space=sflag, size = 0x8, scoped, tag = 'scoped memory for tpu_custom_call.1']
    #allocation5 [shape = 'u8[65536]{0}', space=vmem, size = 0x10000, scoped, tag = 'output window, operand 0']
    %10 = vsyncpa [#allocation3], 0
    %s11 = scalar_lea.sflag [#allocation3], 1
    %12 = vsyncpa %s11, 0
    %13 = vsyncpa [#allocation4], 0
    %s14 = scalar_lea.sflag [#allocation4], 1
    %15 = vsyncpa %s14, 0
    loop: start=0, step=1, limit=4
    $region2: #{tpu_custom_call.1} parent=1 // loop_pre_header
      _
    $region3: #{tpu_custom_call.1} parent=1 // loop_header
      %s17 = sphi 0, %s21
      %p18 = scmp.ge.s32.totalorder %s17, 4
      %s27 = sphi 0, %s29
      %s30 = sphi 0, %s27
      %s31 = sphi 0, %s30
      %s47 = sphi 0, %s31
      %s51 = sphi 0, %s51
      %s53 = sphi 0, %s51
      %s54 = sphi 0, %s53
      %s68 = sphi 0, %s54
      %s72 = sphi 0, %s72
      %s74 = sphi 0, %s72
      %s75 = sphi 0, %s74
      %s89 = sphi 0, %s75
      %s93 = sphi 0, %s93
      %s95 = sphi 0, %s93
      %s96 = sphi 0, %s95
      %s110 = sphi 0, %s96
      %s114 = sphi 0, %s114
      %s116 = sphi 0, %s114
      %s117 = sphi 0, %s116
      %s131 = sphi 0, %s117
      %s137 = sphi 0, %s139
      %s140 = sphi 0, %s137
      %s141 = sphi 0, %s140
      %s157 = sphi 0, %s141
    $region4: #{tpu_custom_call.1} parent=1 // loop_header_branch
      %20 = sbr.rel (%p18) target = $region8
    $region5: #{tpu_custom_call.1} parent=1 // loop_body
      %s22 = ssub.s32 %s17, 1
      %s23 = ssub.s32 %s17, 2
      %s24 = sadd.s32 %s17, 1
      %s25 = ssub.s32 %s17, %s24
      %p26 = scmp.eq.s32.totalorder %s25, 0
      %s28 = sadd.s32 %s27, 1
      %s29 = scalar_select %p26, %s27, %s28
      %p32 = pneg %p26
      %p33 = scmp.eq.s32.totalorder %s17, 1
      %p34 = por %p32, %p33
      %p35 = scmp.ne.s32.totalorder %s27, %s30
      %p36 = scmp.eq.s32.totalorder %s17, 0
      %p37 = por %p35, %p36
      %p38 = scmp.ne.s32.totalorder %s27, %s30
      %p39 = scmp.eq.s32.totalorder %s22, 1
      %p40 = por %p38, %p39
      %p41 = scmp.ne.s32.totalorder %s30, %s31
      %p42 = scmp.eq.s32.totalorder %s22, 0
      %p43 = por %p41, %p42
      %p44 = scmp.ne.s32.totalorder %s30, %s31
      %p45 = scmp.eq.s32.totalorder %s23, 1
      %p46 = por %p44, %p45
      %p48 = scmp.ne.s32.totalorder %s31, %s47
      %p49 = scmp.eq.s32.totalorder %s23, 0
      %p50 = por %p48, %p49
      %s52 = sadd.s32 %s51, 1
      %p55 = scmp.eq.s32.totalorder %s17, 1
      %p56 = scmp.ne.s32.totalorder %s51, %s53
      %p57 = scmp.eq.s32.totalorder %s17, 0
      %p58 = por %p56, %p57
      %p59 = scmp.ne.s32.totalorder %s51, %s53
      %p60 = scmp.eq.s32.totalorder %s22, 1
      %p61 = por %p59, %p60
      %p62 = scmp.ne.s32.totalorder %s53, %s54
      %p63 = scmp.eq.s32.totalorder %s22, 0
      %p64 = por %p62, %p63
      %p65 = scmp.ne.s32.totalorder %s53, %s54
      %p66 = scmp.eq.s32.totalorder %s23, 1
      %p67 = por %p65, %p66
      %p69 = scmp.ne.s32.totalorder %s54, %s68
      %p70 = scmp.eq.s32.totalorder %s23, 0
      %p71 = por %p69, %p70
      %s73 = sadd.s32 %s72, 1
      %p76 = scmp.eq.s32.totalorder %s17, 1
      %p77 = scmp.ne.s32.totalorder %s72, %s74
      %p78 = scmp.eq.s32.totalorder %s17, 0
      %p79 = por %p77, %p78
      %p80 = scmp.ne.s32.totalorder %s72, %s74
      %p81 = scmp.eq.s32.totalorder %s22, 1
      %p82 = por %p80, %p81
      %p83 = scmp.ne.s32.totalorder %s74, %s75
      %p84 = scmp.eq.s32.totalorder %s22, 0
      %p85 = por %p83, %p84
      %p86 = scmp.ne.s32.totalorder %s74, %s75
      %p87 = scmp.eq.s32.totalorder %s23, 1
      %p88 = por %p86, %p87
      %p90 = scmp.ne.s32.totalorder %s75, %s89
      %p91 = scmp.eq.s32.totalorder %s23, 0
      %p92 = por %p90, %p91
      %s94 = sadd.s32 %s93, 1
      %p97 = scmp.eq.s32.totalorder %s17, 1
      %p98 = scmp.ne.s32.totalorder %s93, %s95
      %p99 = scmp.eq.s32.totalorder %s17, 0
      %p100 = por %p98, %p99
      %p101 = scmp.ne.s32.totalorder %s93, %s95
      %p102 = scmp.eq.s32.totalorder %s22, 1
      %p103 = por %p101, %p102
      %p104 = scmp.ne.s32.totalorder %s95, %s96
      %p105 = scmp.eq.s32.totalorder %s22, 0
      %p106 = por %p104, %p105
      %p107 = scmp.ne.s32.totalorder %s95, %s96
      %p108 = scmp.eq.s32.totalorder %s23, 1
      %p109 = por %p107, %p108
      %p111 = scmp.ne.s32.totalorder %s96, %s110
      %p112 = scmp.eq.s32.totalorder %s23, 0
      %p113 = por %p111, %p112
      %s115 = sadd.s32 %s114, 1
      %p118 = scmp.eq.s32.totalorder %s17, 1
      %p119 = scmp.ne.s32.totalorder %s114, %s116
      %p120 = scmp.eq.s32.totalorder %s17, 0
      %p121 = por %p119, %p120
      %p122 = scmp.ne.s32.totalorder %s114, %s116
      %p123 = scmp.eq.s32.totalorder %s22, 1
      %p124 = por %p122, %p123
      %p125 = scmp.ne.s32.totalorder %s116, %s117
      %p126 = scmp.eq.s32.totalorder %s22, 0
      %p127 = por %p125, %p126
      %p128 = scmp.ne.s32.totalorder %s116, %s117
      %p129 = scmp.eq.s32.totalorder %s23, 1
      %p130 = por %p128, %p129
      %p132 = scmp.ne.s32.totalorder %s117, %s131
      %p133 = scmp.eq.s32.totalorder %s23, 0
      %p134 = por %p132, %p133
      %s135 = ssub.s32 %s17, %s24
      %p136 = scmp.eq.s32.totalorder %s135, 0
      %s138 = sadd.s32 %s137, 1
      %s139 = scalar_select %p136, %s137, %s138
      %p142 = pneg %p136
      %p143 = scmp.eq.s32.totalorder %s17, 1
      %p144 = por %p142, %p143
      %p145 = scmp.ne.s32.totalorder %s137, %s140
      %p146 = scmp.eq.s32.totalorder %s17, 0
      %p147 = por %p145, %p146
      %p148 = scmp.ne.s32.totalorder %s137, %s140
      %p149 = scmp.eq.s32.totalorder %s22, 1
      %p150 = por %p148, %p149
      %p151 = scmp.ne.s32.totalorder %s140, %s141
      %p152 = scmp.eq.s32.totalorder %s22, 0
      %p153 = por %p151, %p152
      %p154 = scmp.ne.s32.totalorder %s140, %s141
      %p155 = scmp.eq.s32.totalorder %s23, 1
      %p156 = por %p154, %p155
      %p158 = scmp.ne.s32.totalorder %s141, %s157
      %p159 = scmp.eq.s32.totalorder %s23, 0
      %p160 = por %p158, %p159
      %p161 = scmp.le.s32.totalorder 1, %s17
      %p162 = scmp.lt.s32.totalorder %s17, 3
      %p163 = pnand %p161, %p162
      %p164 = pneg %p163
      // Predicated region
      $region9: #{tpu_custom_call.1} parent=5 // pred_check
        _
      $region10: #{tpu_custom_call.1} parent=5 // pred_check_branch
        %166 = sbr.rel (%p163) target = $region12
      $region11: #{tpu_custom_call.1} parent=5 // pred_region
        %s167 = ssub.s32 %s17, 1
        // Predicated region
        $region13: #{tpu_custom_call.1} parent=11 // pred_check
          %p168 = pneg %p64
        $region14: #{tpu_custom_call.1} parent=11 // pred_check_branch
          %170 = sbr.rel (%p168) target = $region16
        $region15: #{tpu_custom_call.1} parent=11 // pred_region
          _
        $region16: #{tpu_custom_call.1} parent=11 // pred_fallthru
          _
        // Predicated region
        $region17: #{tpu_custom_call.1} parent=11 // pred_check
          %p171 = pneg %p85
        $region18: #{tpu_custom_call.1} parent=11 // pred_check_branch
          %173 = sbr.rel (%p171) target = $region20
        $region19: #{tpu_custom_call.1} parent=11 // pred_region
          _
        $region20: #{tpu_custom_call.1} parent=11 // pred_fallthru
          _
        // Predicated region
        $region21: #{tpu_custom_call.1} parent=11 // pred_check
          %p174 = pneg %p106
        $region22: #{tpu_custom_call.1} parent=11 // pred_check_branch
          %176 = sbr.rel (%p174) target = $region24
        $region23: #{tpu_custom_call.1} parent=11 // pred_region
          _
        $region24: #{tpu_custom_call.1} parent=11 // pred_fallthru
          _
        // Predicated region
        $region25: #{tpu_custom_call.1} parent=11 // pred_check
          %p177 = pneg %p127
        $region26: #{tpu_custom_call.1} parent=11 // pred_check_branch
          %179 = sbr.rel (%p177) target = $region28
        $region27: #{tpu_custom_call.1} parent=11 // pred_region
          _
        $region28: #{tpu_custom_call.1} parent=11 // pred_fallthru
          _
      $region12: #{tpu_custom_call.1} parent=5 // pred_fallthru
        _
      %p180 = scmp.lt.s32.totalorder %s17, 2
      // Predicated region
      $region29: #{tpu_custom_call.1} parent=5 // pred_check
        %p181 = pneg %p180
      $region30: #{tpu_custom_call.1} parent=5 // pred_check_branch
        %183 = sbr.rel (%p181) target = $region32
      $region31: #{tpu_custom_call.1} parent=5 // pred_region
        // Predicated region
        $region33: #{tpu_custom_call.1} parent=31 // pred_check
          %p184 = pneg %p37
        $region34: #{tpu_custom_call.1} parent=31 // pred_check_branch
          %186 = sbr.rel (%p184) target = $region36
        $region35: #{tpu_custom_call.1} parent=31 // pred_region
          %s187 = sand.u32 %s27, 1
          %s188 = scalar_lea.sflag [#allocation3], %s187
          %s189 = sand.u32 %s27, 1
          %s190 = smul.addr %s189, 64
          %s191 = scalar_lea.vmem [#allocation2], %s190
          %s193 = ssub.s32 1024, 1024
          %194 = vsyncadd %s188, %s193
          %s195 = smul.addr %s17, 8
          %s196 = smul.addr %s195, 128
          %s197 = scalar_lea.hbm %s0, %s196
          %s198 = sshll.u32 %s191, 4
          %s199 = int_to_ptr.vmem [resolvable:$true] %s198
          %204 = dma.hbm_to_vmem [thread:$0]  %s197, 1024, %s199, %s188, 256, 256, 16
        $region36: #{tpu_custom_call.1} parent=31 // pred_fallthru
          _
      $region32: #{tpu_custom_call.1} parent=5 // pred_fallthru
        _
      %p205 = scmp.le.s32.totalorder 1, %s17
      %p206 = scmp.lt.s32.totalorder %s17, 3
      %p207 = pnand %p205, %p206
      %p208 = pneg %p207
      // Predicated region
      $region37: #{tpu_custom_call.1} parent=5 // pred_check
        _
      $region38: #{tpu_custom_call.1} parent=5 // pred_check_branch
        %210 = sbr.rel (%p207) target = $region40
      $region39: #{tpu_custom_call.1} parent=5 // pred_region
        %s211 = ssub.s32 %s17, 1
        %s212 = sand.u32 %s30, 1
        %s213 = scalar_lea.sflag [#allocation3], %s212
        %s214 = sand.u32 %s30, 1
        %s215 = smul.addr %s214, 64
        %s216 = scalar_lea.vmem [#allocation2], %s215
        // Predicated region
        $region41: #{tpu_custom_call.1} parent=39 // pred_check
          %p217 = pneg %p43
        $region42: #{tpu_custom_call.1} parent=39 // pred_check_branch
          %219 = sbr.rel (%p217) target = $region44
        $region43: #{tpu_custom_call.1} parent=39 // pred_region
          %220 = dma.done %s213, 1024
        $region44: #{tpu_custom_call.1} parent=39 // pred_fallthru
          _
        %s221 = sand.u32 %s30, 1
        %s222 = scalar_lea.sflag [#allocation3], %s221
        %s223 = sand.u32 %s30, 1
        %s224 = smul.addr %s223, 64
        %s225 = scalar_lea.vmem [#allocation2], %s224
        %p226 = pneg %p43
        %p227 = pneg %p40
        %p228 = pneg %p64
        %p229 = pneg %p61
        %p230 = pneg %p85
        %p231 = pneg %p82
        %p232 = pneg %p106
        %p233 = pneg %p103
        %p234 = pneg %p127
        %p235 = pneg %p124
        %p236 = pneg %p153
        %p237 = pneg %p150
        %s238 = sand.u32 %s140, 1
        %s239 = scalar_lea.sflag [#allocation4], %s238
        %s240 = sand.u32 %s140, 1
        %s241 = smul.addr %s240, 64
        %s242 = scalar_lea.vmem [#allocation5], %s241
        %v243 = vld [vmem:[%s1] sm:$0xff]
        %v244 = vld [vmem:[%s1 + $0x8] sm:$0xff]
        %v245 = vld [vmem:[%s1 + $0x10] sm:$0xff]
        %v246 = vld [vmem:[%s1 + $0x18] sm:$0xff]
        %v247 = vld [vmem:[%s2] sm:$0x1]
        %v248 = vld [vmem:[%s3] sm:$0xff]
        %v249 = vld [vmem:[%s3 + $0x8] sm:$0xff]
        %v250 = vld [vmem:[%s3 + $0x10] sm:$0xff]
        %v251 = vld [vmem:[%s3 + $0x18] sm:$0xff]
        %v252 = vld [vmem:[%s4] sm:$0xff]
        %v253 = vld [vmem:[%s4 + $0x8] sm:$0xff]
        %v254 = vld [vmem:[%s4 + $0x10] sm:$0xff]
        %v255 = vld [vmem:[%s4 + $0x18] sm:$0xff]
        %v256 = vld [vmem:[%s216] sm:$0xff]
        %v257 = vld [vmem:[%s216 + $0x8] sm:$0xff]
        %v258 = vld [vmem:[%s216 + $0x10] sm:$0xff]
        %v259 = vld [vmem:[%s216 + $0x18] sm:$0xff]
        %v260 = vld [vmem:[%s216 + $0x20] sm:$0xff]
        %v261 = vld [vmem:[%s216 + $0x28] sm:$0xff]
        %v262 = vld [vmem:[%s216 + $0x30] sm:$0xff]
        %v263 = vld [vmem:[%s216 + $0x38] sm:$0xff]
        %v264 = vadd.f32 %v256, %v257
        %265 = vadd.xlane.f32.xlu0 %v264
        %v266 = vpop.xlane.xlu0 %265
        %v267 = vadd.f32 %v258, %v259
        %268 = vadd.xlane.f32.xlu0 %v267
        %v269 = vpop.xlane.xlu0 %268
        %v270 = vadd.f32 %v260, %v261
        %271 = vadd.xlane.f32.xlu0 %v270
        %v272 = vpop.xlane.xlu0 %271
        %v273 = vadd.f32 %v262, %v263
        %274 = vadd.xlane.f32.xlu0 %v273
        %v275 = vpop.xlane.xlu0 %274
        %v276 = vmul.f32 %v266, 0.00390625
        %v277 = vmul.f32 %v269, 0.00390625
        %v278 = vmul.f32 %v272, 0.00390625
        %v279 = vmul.f32 %v275, 0.00390625
        %v280 = vmax.f32 %v256, %v257
        %281 = vmax.xlane.f32.xlu0 %v280
        %v282 = vpop.xlane.xlu0 %281
        %v283 = vmax.f32 %v258, %v259
        %284 = vmax.xlane.f32.xlu0 %v283
        %v285 = vpop.xlane.xlu0 %284
        %v286 = vmax.f32 %v260, %v261
        %287 = vmax.xlane.f32.xlu0 %v286
        %v288 = vpop.xlane.xlu0 %287
        %v289 = vmax.f32 %v262, %v263
        %290 = vmax.xlane.f32.xlu0 %v289
        %v291 = vpop.xlane.xlu0 %290
        %v292 = vmul.f32 %v243, %v276
        %v293 = vmul.f32 %v244, %v277
        %v294 = vmul.f32 %v245, %v278
        %v295 = vmul.f32 %v246, %v279
        %v296 = vmul.f32 %v243, %v282
        %v297 = vmul.f32 %v244, %v285
        %v298 = vmul.f32 %v245, %v288
        %v299 = vmul.f32 %v246, %v291
        %304 = vrot.lane.b32.xlu0 %v296, 2
        %v305 = vpop.permute.xlu0 %304
        %306 = vrot.lane.b32.xlu0 %v297, 2
        %v307 = vpop.permute.xlu0 %306
        %308 = vrot.lane.b32.xlu0 %v298, 2
        %v309 = vpop.permute.xlu0 %308
        %310 = vrot.lane.b32.xlu0 %v299, 2
        %v311 = vpop.permute.xlu0 %310
        %vm316 = vcmask 15360
        %v317 = vsel %vm316, %v292, %v305
        %v318 = vsel %vm316, %v293, %v307
        %v319 = vsel %vm316, %v294, %v309
        %v320 = vsel %vm316, %v295, %v311
        %vm321 = vcmask 31744
        %v322 = vsel %vm321, %v317, 0.0
        %v323 = vsel %vm321, %v318, 0.0
        %v324 = vadd.f32 %v322, %v323
        %v325 = vsel %vm321, %v319, 0.0
        %v326 = vadd.f32 %v324, %v325
        %v327 = vsel %vm321, %v320, 0.0
        %v328 = vadd.f32 %v326, %v327
        %v329 = vrot.slane %v328, 4
        %v330 = vadd.f32 %v328, %v329
        %v331 = vrot.slane %v330, 2
        %v332 = vadd.f32 %v330, %v331
        %v333 = vrot.slane %v332, 1
        %v334 = vadd.f32 %v332, %v333
        %v335 = vadd.f32 %v334, %v247
        %v336 = vmax.f32 %v335, 0.0
        %v338 = vlaneseq
        %v339 = vshrl.u32 %v338, 7
        %v340 = vsub.s32 0, %v339
        %v341 = vrot.slane %v247, %v340
        %342 = vrot.lane.b32.xlu0 %v341, 2
        %v343 = vpop.permute.xlu0 %342
        %v345 = vadd.f32 %v334, %v343
        %v346 = vmax.f32 %v345, 0.0
        %348 = vrot.lane.b32.xlu0 %v346, 126
        %v349 = vpop.permute.xlu0 %348
        %v351 = vadd.f32 %v336, %v349
        %v352 = vlaneseq
        %v353 = vshrl.u32 %v352, 7
        %v354 = vsub.s32 0, %v353
        %v355 = vrot.slane %v351, %v354
        %v356 = vmul.f32 %v248, %v355
        %v357 = vmul.f32 %v249, %v355
        %v358 = vmul.f32 %v250, %v355
        %v359 = vmul.f32 %v251, %v355
        %v360 = vsel %vm316, %v356, 0.0
        %361 = vadd.xlane.f32.xlu0 %v360
        %v362 = vpop.xlane.xlu0 %361
        %v363 = vsel %vm316, %v357, 0.0
        %364 = vadd.xlane.f32.xlu0 %v363
        %v365 = vpop.xlane.xlu0 %364
        %v366 = vsel %vm316, %v358, 0.0
        %367 = vadd.xlane.f32.xlu0 %v366
        %v368 = vpop.xlane.xlu0 %367
        %v369 = vsel %vm316, %v359, 0.0
        %370 = vadd.xlane.f32.xlu0 %v369
        %v371 = vpop.xlane.xlu0 %370
        %v372 = vmul.f32 %v252, 2.0
        %v373 = vmul.f32 %v253, 2.0
        %v374 = vmul.f32 %v254, 2.0
        %v375 = vmul.f32 %v255, 2.0
        %v376 = vadd.f32 %v362, %v372
        %v377 = vadd.f32 %v365, %v373
        %v378 = vadd.f32 %v368, %v374
        %v379 = vadd.f32 %v371, %v375
        %v380 = vxor.u32 %v376, 2147483648
        %v381 = vxor.u32 %v377, 2147483648
        %v382 = vxor.u32 %v378, 2147483648
        %v383 = vxor.u32 %v379, 2147483648
        %v384 = vmul.f32 %v380, 1.442695
        %v385 = vpow.pop %v384
        %v386 = vmul.f32 %v381, 1.442695
        %v387 = vpow.pop %v386
        %v388 = vmul.f32 %v382, 1.442695
        %v389 = vpow.pop %v388
        %v390 = vmul.f32 %v383, 1.442695
        %v391 = vpow.pop %v390
        %v392 = vadd.f32 %v385, 1.0
        %v393 = vadd.f32 %v387, 1.0
        %v394 = vadd.f32 %v389, 1.0
        %v395 = vadd.f32 %v391, 1.0
        %v396 = vrcp.pop %v392
        %v397 = vmul.f32 1.0, %v396
        %v398 = vrcp.pop %v393
        %v399 = vmul.f32 1.0, %v398
        %v400 = vrcp.pop %v394
        %v401 = vmul.f32 1.0, %v400
        %v402 = vrcp.pop %v395
        %v403 = vmul.f32 1.0, %v402
        %405 = vset.pattern.permute.xlu0 0
        %406 = vperm.xlu0 %405, %v397
        %v407 = vpop.permute.xlu0 %406
        %410 = vset.pattern.permute.xlu0 0
        %411 = vperm.xlu0 %410, %v399
        %v412 = vpop.permute.xlu0 %411
        %415 = vset.pattern.permute.xlu0 0
        %416 = vperm.xlu0 %415, %v401
        %v417 = vpop.permute.xlu0 %416
        %420 = vset.pattern.permute.xlu0 0
        %421 = vperm.xlu0 %420, %v403
        %v422 = vpop.permute.xlu0 %421
        %v424 = vmul.f32 %v256, %v407
        %v425 = vmul.f32 %v257, %v407
        %v426 = vmul.f32 %v258, %v412
        %v427 = vmul.f32 %v259, %v412
        %v428 = vmul.f32 %v260, %v417
        %v429 = vmul.f32 %v261, %v417
        %v430 = vmul.f32 %v262, %v422
        %v431 = vmul.f32 %v263, %v422
        %432 = vst [vmem:[%s242] sm:$0xff] %v424
        %433 = vst [vmem:[%s242 + $0x8] sm:$0xff] %v425
        %434 = vst [vmem:[%s242 + $0x10] sm:$0xff] %v426
        %435 = vst [vmem:[%s242 + $0x18] sm:$0xff] %v427
        %436 = vst [vmem:[%s242 + $0x20] sm:$0xff] %v428
        %437 = vst [vmem:[%s242 + $0x28] sm:$0xff] %v429
        %438 = vst [vmem:[%s242 + $0x30] sm:$0xff] %v430
        %439 = vst [vmem:[%s242 + $0x38] sm:$0xff] %v431
        %s440 = sand.u32 %s140, 1
        %s441 = scalar_lea.sflag [#allocation4], %s440
        %s442 = sand.u32 %s140, 1
        %s443 = smul.addr %s442, 64
        %s444 = scalar_lea.vmem [#allocation5], %s443
        // Predicated region
        $region45: #{tpu_custom_call.1} parent=39 // pred_check
          %p445 = pneg %p150
        $region46: #{tpu_custom_call.1} parent=39 // pred_check_branch
          %447 = sbr.rel (%p445) target = $region48
        $region47: #{tpu_custom_call.1} parent=39 // pred_region
          %s449 = ssub.s32 1024, 1024
          %450 = vsyncadd %s441, %s449
          %s451 = smul.addr %s22, 8
          %s452 = smul.addr %s451, 128
          %s453 = scalar_lea.hbm %s5, %s452
          %s454 = sshll.u32 %s444, 4
          %s455 = int_to_ptr.vmem [resolvable:$true] %s454
          %460 = dma.vmem_to_hbm [thread:$0]  %s455, 1024, %s453, %s441, 256, 256, 16
        $region48: #{tpu_custom_call.1} parent=39 // pred_fallthru
          _
      $region40: #{tpu_custom_call.1} parent=5 // pred_fallthru
        _
      %p461 = scmp.le.s32.totalorder 2, %s17
      // Predicated region
      $region49: #{tpu_custom_call.1} parent=5 // pred_check
        %p462 = pneg %p461
      $region50: #{tpu_custom_call.1} parent=5 // pred_check_branch
        %464 = sbr.rel (%p462) target = $region52
      $region51: #{tpu_custom_call.1} parent=5 // pred_region
        %s465 = ssub.s32 %s17, 2
        // Predicated region
        $region53: #{tpu_custom_call.1} parent=51 // pred_check
          %p466 = pneg %p156
        $region54: #{tpu_custom_call.1} parent=51 // pred_check_branch
          %468 = sbr.rel (%p466) target = $region56
        $region55: #{tpu_custom_call.1} parent=51 // pred_region
          %s469 = sand.u32 %s141, 1
          %s470 = scalar_lea.sflag [#allocation4], %s469
          %s471 = sand.u32 %s141, 1
          %s472 = smul.addr %s471, 64
          %s473 = scalar_lea.vmem [#allocation5], %s472
          %474 = dma.done %s470, 1024
        $region56: #{tpu_custom_call.1} parent=51 // pred_fallthru
          _
      $region52: #{tpu_custom_call.1} parent=5 // pred_fallthru
        _
    $region6: #{tpu_custom_call.1} parent=1 // loop_footer
      %s21 = sadd.s32 1, %s17
    $region7: #{tpu_custom_call.1} parent=1 // loop_footer_branch
      %16 = sbr.rel target = $region3
    $region8: #{tpu_custom_call.1} parent=1 // loop_exit
      _
    %475 = vsyncpa [#allocation3], 1
    %s476 = scalar_lea.sflag [#allocation3], 1
    %477 = vsyncpa %s476, 1
    %478 = vsyncpa [#allocation4], 1
    %s479 = scalar_lea.sflag [#allocation4], 1
    %480 = vsyncpa %s479, 1

</llo_original>
